<compile_context>
chip_gen: v7x
topology: tpu7x:2x2x1
jax: 0.10.0
libtpu: 0.0.40
codegen_flags: <defaults>
</compile_context>

<pallas_src>
import functools

import jax
import jax.numpy as jnp
from jax.experimental import pallas as pl
from jax.experimental.pallas import tpu as pltpu

_LANE = 128


def _round_up(x, m):
    return ((x + m - 1) // m) * m


def _tpu_vmem_capacity_bytes():
    try:
        return int(pltpu.get_tpu_info().vmem_capacity_bytes)
    except Exception:
        return 64 << 20  # conservative fallback


def _num_tensorcores_per_chip():
    try:
        kind = getattr(jax.devices()[0], "device_kind", "").lower()
        if "v7" in kind:
            return 2
    except Exception:
        pass
    return 1


def _mlp_kernel(num_layers, x_ref, *refs):
    """Fused MLP block: for each layer, relu(act @ W + b).

    refs = (w_0, b_0, w_1, b_1, ..., w_{L-1}, b_{L-1}, o_ref).
    The activation chain stays in vregs / VMEM temporaries; nothing round-trips HBM
    between layers.
    """
    o_ref = refs[-1]
    act = x_ref[...]                                   # compute_dtype (bm, K0_pad)
    y = act.astype(jnp.float32)                        # num_layers == 0 -> identity
    for l in range(num_layers):                        # unrolled at trace time
        w = refs[2 * l][...]                           # compute_dtype (K_pad, N_pad)
        b = refs[2 * l + 1][...]                       # f32          (1,     N_pad)
        y = jnp.dot(act, w, preferred_element_type=jnp.float32)   # MXU, f32 acc
        y = jnp.maximum(y + b, 0.0)                    # bias + ReLU in f32 (VPU)
        if l < num_layers - 1:
            act = y.astype(w.dtype)                    # narrow for the next MXU pass
    o_ref[...] = y.astype(o_ref.dtype)


def pack_params(params, compute_dtype=jnp.bfloat16):
    """One-time preparation: zero-pad feature dims to the 128-lane grid and cast
    weights to the MXU compute dtype.  Call ONCE (e.g. at init), not per forward.

    params: list of ((K_l, N_l) W, (N_l,) b) with W already stored transposed
    relative to PyTorch nn.Linear.  Zero padding is exact for Linear+ReLU chains.
    """
    assert len(params) >= 1
    dims = [params[0][0].shape[0]] + [w.shape[1] for (w, _) in params]
    for l, (w, b) in enumerate(params):
        assert w.shape == (dims[l], dims[l + 1]) and b.shape == (dims[l + 1],)
    dims_pad = [_round_up(d, _LANE) for d in dims]
    ws, bs = [], []
    for l, (w, b) in enumerate(params):
        kp, np_ = dims_pad[l], dims_pad[l + 1]
        wp = jnp.zeros((kp, np_), compute_dtype).at[:dims[l], :dims[l + 1]].set(
            w.astype(compute_dtype))
        bp = jnp.zeros((1, np_), jnp.float32).at[0, :dims[l + 1]].set(
            b.astype(jnp.float32))
        ws.append(wp)
        bs.append(bp)
    return ws, bs


@functools.partial(jax.jit, static_argnames=("out_dim", "out_dtype", "block_m"))
def fully_connected_layers_forward(x, ws, bs, *, out_dim, out_dtype=jnp.float32,
                                   block_m=None):
    """Fused forward pass.  x: (M, K0) f32; ws/bs: pre-padded tensors from
    pack_params(); out_dim: logical (unpadded) output width."""
    num_layers = len(ws)
    assert num_layers >= 1 and len(bs) == num_layers
    M, K0 = x.shape
    compute_dtype = ws[0].dtype
    cbytes = jnp.dtype(compute_dtype).itemsize
    obytes = jnp.dtype(out_dtype).itemsize

    dims_pad = [ws[0].shape[0]] + [w.shape[1] for w in ws]
    assert K0 <= dims_pad[0] and out_dim <= dims_pad[-1]
    for l, (w, b) in enumerate(zip(ws, bs)):
        assert w.shape == (dims_pad[l], dims_pad[l + 1])
        assert b.shape == (1, dims_pad[l + 1])
    k0_pad, n_last_pad, max_pad = dims_pad[0], dims_pad[-1], max(dims_pad)

    bytes_w = sum(int(w.size) * w.dtype.itemsize for w in ws)
    bytes_b = sum(int(b.size) * b.dtype.itemsize for b in bs)
    # Default pipelining double-buffers every input, including the grid-invariant
    # weights/biases (constant index_map) -> count them twice.
    resident = 2 * (bytes_w + bytes_b)
    # Per batch-row VMEM: double-buffered input tile + double-buffered output tile
    # + live f32 intermediate activation + its compute_dtype recast for the next
    # MXU pass (Mosaic internal scratch for the unrolled layer chain).
    per_row = (2 * k0_pad * cbytes + 2 * n_last_pad * obytes
               + 2 * max_pad * 4 + max_pad * cbytes)

    vmem_cap = _tpu_vmem_capacity_bytes()
    if vmem_cap <= (64 << 20):            # v7x-class: leave headroom for Mosaic scratch
        usable = min(52 << 20, vmem_cap - (8 << 20))
    else:                                 # v5e / v6e: 128 MiB physical VMEM
        usable = 96 << 20
    sub = 16 if cbytes < 4 else 8         # bf16 packs 16 sublanes per vreg

    if block_m is None:
        bm_cap = 1024 if vmem_cap > (64 << 20) else 512
        bm = max(sub, min(bm_cap, _round_up(M, sub)))
        budget = max(sub * per_row, usable - resident)
        while bm > sub and bm * per_row > budget:
            bm -= sub
        # Split only where there is a second TensorCore to feed (v7x), and then to
        # an even step count so both cores stay busy.
        if _num_tensorcores_per_chip() == 2:
            def _steps(b):
                return (M + b - 1) // b
            while bm > sub and (_steps(bm) < 2 or _steps(bm) % 2 != 0):
                bm -= sub
        block_m = bm
    assert block_m % sub == 0, "block_m must respect the sublane packing"

    M_pad = _round_up(max(M, block_m), block_m)
    # Pad + cast; with allow_input_fusion this folds into the pallas_call operand
    # instead of materialising a separate padded copy of x in HBM.
    x_pad = jnp.pad(x.astype(compute_dtype), ((0, M_pad - M), (0, k0_pad - K0)))

    grid = (M_pad // block_m,)
    in_specs = [pl.BlockSpec((block_m, k0_pad), lambda i: (i, 0))]
    for l in range(num_layers):
        # Whole weight/bias resident in VMEM; constant index_map -> DMA'd once.
        in_specs.append(pl.BlockSpec((dims_pad[l], dims_pad[l + 1]), lambda i: (0, 0)))
        in_specs.append(pl.BlockSpec((1, dims_pad[l + 1]), lambda i: (0, 0)))
    out_spec = pl.BlockSpec((block_m, n_last_pad), lambda i: (i, 0))

    need = resident + block_m * per_row
    vmem_limit = int(max(need, min(usable, need + (4 << 20))))

    flops = sum(2 * M_pad * dims_pad[l] * dims_pad[l + 1] for l in range(num_layers))
    bytes_accessed = int(M_pad * k0_pad * cbytes + bytes_w + bytes_b
                         + M_pad * n_last_pad * obytes)

    out = pl.pallas_call(
        functools.partial(_mlp_kernel, num_layers),
        out_shape=jax.ShapeDtypeStruct((M_pad, n_last_pad), out_dtype),
        grid_spec=pltpu.PrefetchScalarGridSpec(
            num_scalar_prefetch=0,
            grid=grid,
            in_specs=in_specs,
            out_specs=out_spec,
        ),
        compiler_params=pltpu.CompilerParams(
            dimension_semantics=("parallel",),
            vmem_limit_bytes=vmem_limit,
            allow_input_fusion=[True] + [False] * (2 * num_layers),
        ),
        cost_estimate=pl.CostEstimate(flops=flops, transcendentals=0,
                                      bytes_accessed=bytes_accessed),
    )(x_pad, *[a for pair in zip(ws, bs) for a in pair])

    return out[:M, :out_dim]


def init_fully_connected_layers(key, input_dim, output_dim, num_layers=1,
                                hidden_dim=128):
    """PyTorch-style nn.Linear init (uniform +-1/sqrt(fan_in)); weights stored
    transposed as (in, out)."""
    layers_dim = [input_dim] + [hidden_dim] * (num_layers - 1) + [output_dim]
    params = []
    for d_in, d_out in zip(layers_dim[:-1], layers_dim[1:]):
        key, kw, kb = jax.random.split(key, 3)
        bound = 1.0 / jnp.sqrt(float(d_in))
        w = jax.random.uniform(kw, (d_in, d_out), jnp.float32, -bound, bound)
        b = jax.random.uniform(kb, (d_out,), jnp.float32, -bound, bound)
        params.append((w, b))
    return params


if __name__ == "__main__":
    # Small shapes consistent with the module (hidden_dim scale); single TC -> one tile.
    batch, input_dim, hidden_dim, output_dim, num_layers = 64, 32, 64, 16, 3

    key = jax.random.PRNGKey(0)
    kx, kp = jax.random.split(key)
    x = jax.random.normal(kx, (batch, input_dim), jnp.float32)

    params = init_fully_connected_layers(
        kp, input_dim, output_dim, num_layers=num_layers, hidden_dim=hidden_dim)
    ws, bs = pack_params(params)          # one-time pad + cast (hoisted out of forward)

    out = fully_connected_layers_forward(x, ws, bs, out_dim=output_dim)
    out = jax.block_until_ready(out)
    assert out.shape == (batch, output_dim)

    # Reference replicating the kernel's numerics (bf16 matmul operands, f32
    # accumulate, f32 bias+ReLU) — eval semantics, dropout identity.
    ref_bf16 = x
    for (w, b) in params:
        y = jnp.dot(ref_bf16.astype(jnp.bfloat16), w.astype(jnp.bfloat16),
                    preferred_element_type=jnp.float32) + b
        ref_bf16 = jnp.maximum(y, 0.0)
    assert jnp.allclose(out, ref_bf16, atol=1e-3, rtol=1e-3)

    # Loose sanity check against the pure-f32 reference (bf16 MXU inputs are a
    # documented, deliberate precision choice).
    ref_f32 = x
    for (w, b) in params:
        ref_f32 = jnp.maximum(ref_f32 @ w + b, 0.0)
    assert jnp.allclose(out, ref_f32, atol=5e-2, rtol=5e-2)

    print("KERNEL_OK")
</pallas_src>

<mosaic_0001>
module attributes {stable_mosaic.version = 11 : i64} {
  func.func @_mlp_kernel(%arg0: i32, %arg1: memref<64x128xbf16, #tpu.memory_space<vmem>>, %arg2: memref<128x128xbf16, #tpu.memory_space<vmem>>, %arg3: memref<1x128xf32, #tpu.memory_space<vmem>>, %arg4: memref<128x128xbf16, #tpu.memory_space<vmem>>, %arg5: memref<1x128xf32, #tpu.memory_space<vmem>>, %arg6: memref<128x128xbf16, #tpu.memory_space<vmem>>, %arg7: memref<1x128xf32, #tpu.memory_space<vmem>>, %arg8: memref<64x128xf32, #tpu.memory_space<vmem>>) attributes {dimension_semantics = [#tpu.dimension_semantics<parallel>], iteration_bounds = array<i64: 1>, scalar_prefetch = 0 : i64, scratch_operands = 0 : i64, tpu.core_type = #tpu.core_type<tc>, window_params = [{transform_indices = @transform_0, window_bounds = array<i64: 64, 128>}, {pipeline_mode = #tpu.pipeline_mode<synchronous>, transform_indices = @transform_1, window_bounds = array<i64: 128, 128>}, {pipeline_mode = #tpu.pipeline_mode<synchronous>, transform_indices = @transform_2, window_bounds = array<i64: 1, 128>}, {pipeline_mode = #tpu.pipeline_mode<synchronous>, transform_indices = @transform_3, window_bounds = array<i64: 128, 128>}, {pipeline_mode = #tpu.pipeline_mode<synchronous>, transform_indices = @transform_4, window_bounds = array<i64: 1, 128>}, {pipeline_mode = #tpu.pipeline_mode<synchronous>, transform_indices = @transform_5, window_bounds = array<i64: 128, 128>}, {pipeline_mode = #tpu.pipeline_mode<synchronous>, transform_indices = @transform_6, window_bounds = array<i64: 1, 128>}, {transform_indices = @transform_7, window_bounds = array<i64: 64, 128>}]} {
    %c0 = arith.constant 0 : index
    %c0_0 = arith.constant 0 : index
    %0 = vector.load %arg1[%c0, %c0_0] : memref<64x128xbf16, #tpu.memory_space<vmem>>, vector<64x128xbf16>
    %c0_1 = arith.constant 0 : index
    %c0_2 = arith.constant 0 : index
    %1 = vector.load %arg2[%c0_1, %c0_2] : memref<128x128xbf16, #tpu.memory_space<vmem>>, vector<128x128xbf16>
    %c0_3 = arith.constant 0 : index
    %c0_4 = arith.constant 0 : index
    %2 = vector.load %arg3[%c0_3, %c0_4] : memref<1x128xf32, #tpu.memory_space<vmem>>, vector<1x128xf32>
    %cst = arith.constant dense<0.000000e+00> : vector<64x128xf32>
    %3 = tpu.matmul %0, %1, %cst {dimension_numbers = #tpu.dot_dimension_numbers<[1], [0], [0], [1], [0, 0, 1, 1], [], []>} : vector<64x128xbf16>, vector<128x128xbf16>, vector<64x128xf32> -> vector<64x128xf32>
    %4 = vector.broadcast %2 : vector<1x128xf32> to vector<64x128xf32>
    %5 = arith.addf %3, %4 : vector<64x128xf32>
    %cst_5 = arith.constant 0.000000e+00 : f32
    %6 = vector.broadcast %cst_5 : f32 to vector<64x128xf32>
    %7 = arith.maximumf %5, %6 : vector<64x128xf32>
    %8 = arith.truncf %7 : vector<64x128xf32> to vector<64x128xbf16>
    %c0_6 = arith.constant 0 : index
    %c0_7 = arith.constant 0 : index
    %9 = vector.load %arg4[%c0_6, %c0_7] : memref<128x128xbf16, #tpu.memory_space<vmem>>, vector<128x128xbf16>
    %c0_8 = arith.constant 0 : index
    %c0_9 = arith.constant 0 : index
    %10 = vector.load %arg5[%c0_8, %c0_9] : memref<1x128xf32, #tpu.memory_space<vmem>>, vector<1x128xf32>
    %cst_10 = arith.constant dense<0.000000e+00> : vector<64x128xf32>
    %11 = tpu.matmul %8, %9, %cst_10 {dimension_numbers = #tpu.dot_dimension_numbers<[1], [0], [0], [1], [0, 0, 1, 1], [], []>} : vector<64x128xbf16>, vector<128x128xbf16>, vector<64x128xf32> -> vector<64x128xf32>
    %12 = vector.broadcast %10 : vector<1x128xf32> to vector<64x128xf32>
    %13 = arith.addf %11, %12 : vector<64x128xf32>
    %cst_11 = arith.constant 0.000000e+00 : f32
    %14 = vector.broadcast %cst_11 : f32 to vector<64x128xf32>
    %15 = arith.maximumf %13, %14 : vector<64x128xf32>
    %16 = arith.truncf %15 : vector<64x128xf32> to vector<64x128xbf16>
    %c0_12 = arith.constant 0 : index
    %c0_13 = arith.constant 0 : index
    %17 = vector.load %arg6[%c0_12, %c0_13] : memref<128x128xbf16, #tpu.memory_space<vmem>>, vector<128x128xbf16>
    %c0_14 = arith.constant 0 : index
    %c0_15 = arith.constant 0 : index
    %18 = vector.load %arg7[%c0_14, %c0_15] : memref<1x128xf32, #tpu.memory_space<vmem>>, vector<1x128xf32>
    %cst_16 = arith.constant dense<0.000000e+00> : vector<64x128xf32>
    %19 = tpu.matmul %16, %17, %cst_16 {dimension_numbers = #tpu.dot_dimension_numbers<[1], [0], [0], [1], [0, 0, 1, 1], [], []>} : vector<64x128xbf16>, vector<128x128xbf16>, vector<64x128xf32> -> vector<64x128xf32>
    %20 = vector.broadcast %18 : vector<1x128xf32> to vector<64x128xf32>
    %21 = arith.addf %19, %20 : vector<64x128xf32>
    %cst_17 = arith.constant 0.000000e+00 : f32
    %22 = vector.broadcast %cst_17 : f32 to vector<64x128xf32>
    %23 = arith.maximumf %21, %22 : vector<64x128xf32>
    %c0_18 = arith.constant 0 : index
    %c0_19 = arith.constant 0 : index
    %24 = vector.load %arg8[%c0_18, %c0_19] : memref<64x128xf32, #tpu.memory_space<vmem>>, vector<64x128xf32>
    tpu.vector_store %arg8[%c0_18, %c0_19], %23 {strides = array<i32>} : memref<64x128xf32, #tpu.memory_space<vmem>>, vector<64x128xf32>,
    return
  }
  func.func @transform_0(%arg0: i32) -> (i32, i32) {
    %c0_i32 = arith.constant 0 : i32
    %c0_i32_0 = arith.constant 0 : i32
    return %arg0, %c0_i32 : i32, i32
  }
  func.func @transform_1(%arg0: i32) -> (i32, i32) {
    %c0_i32 = arith.constant 0 : i32
    %c0_i32_0 = arith.constant 0 : i32
    %c0_i32_1 = arith.constant 0 : i32
    return %c0_i32, %c0_i32_0 : i32, i32
  }
  func.func @transform_2(%arg0: i32) -> (i32, i32) {
    %c0_i32 = arith.constant 0 : i32
    %c0_i32_0 = arith.constant 0 : i32
    %c0_i32_1 = arith.constant 0 : i32
    return %c0_i32, %c0_i32_0 : i32, i32
  }
  func.func @transform_3(%arg0: i32) -> (i32, i32) {
    %c0_i32 = arith.constant 0 : i32
    %c0_i32_0 = arith.constant 0 : i32
    %c0_i32_1 = arith.constant 0 : i32
    return %c0_i32, %c0_i32_0 : i32, i32
  }
  func.func @transform_4(%arg0: i32) -> (i32, i32) {
    %c0_i32 = arith.constant 0 : i32
    %c0_i32_0 = arith.constant 0 : i32
    %c0_i32_1 = arith.constant 0 : i32
    return %c0_i32, %c0_i32_0 : i32, i32
  }
  func.func @transform_5(%arg0: i32) -> (i32, i32) {
    %c0_i32 = arith.constant 0 : i32
    %c0_i32_0 = arith.constant 0 : i32
    %c0_i32_1 = arith.constant 0 : i32
    return %c0_i32, %c0_i32_0 : i32, i32
  }
  func.func @transform_6(%arg0: i32) -> (i32, i32) {
    %c0_i32 = arith.constant 0 : i32
    %c0_i32_0 = arith.constant 0 : i32
    %c0_i32_1 = arith.constant 0 : i32
    return %c0_i32, %c0_i32_0 : i32, i32
  }
  func.func @transform_7(%arg0: i32) -> (i32, i32) {
    %c0_i32 = arith.constant 0 : i32
    %c0_i32_0 = arith.constant 0 : i32
    return %arg0, %c0_i32 : i32, i32
  }
}

</mosaic_0001>

<llo_original>
// kernel: fully_connected_layers_forward.2
$region0: #{fully_connected_layers_forward.2}
  #allocation0 [shape = 'u32[]', space=smem, size = 0x4, offset = 0x4, fixed_abs, tag = 'smem constant byte address 0x4 - core index']
  #allocation1 [shape = 'u32[144,128]{1,0:T(1,128)}', space=vmem, size = 0x12000, scoped, tag = 'internal scratch']
  #allocation2 [shape = 'u32[2048]{0}', space=vmem, size = 0x2000, scoped, tag = 'scoped memory for fully_connected_layers_forward.2']
  #allocation3 [shape = 'u32[2048]{0}', space=vmem, size = 0x2000, scoped, tag = 'scoped memory for fully_connected_layers_forward.2']
  #allocation4 [shape = 'u32[2048]{0}', space=vmem, size = 0x2000, scoped, tag = 'scoped memory for fully_connected_layers_forward.2']
  #allocation5 [shape = 'u32[2048]{0}', space=vmem, size = 0x2000, scoped, tag = 'scoped memory for fully_connected_layers_forward.2']
  #allocation6 [shape = 'u32[2048]{0}', space=vmem, size = 0x2000, scoped, tag = 'scoped memory for fully_connected_layers_forward.2']
  %s0 = inlined_call_operand.vmem [shape: bf16[128,128], index: 0, kind: input, shape index: {}]
  %s1 = inlined_call_operand.vmem [shape: f32[1,128], index: 1, kind: input, shape index: {}]
  %s2 = inlined_call_operand.hbm [shape: bf16[128,128], index: 2, kind: input, shape index: {}]
  %s3 = inlined_call_operand.vmem [shape: f32[1,128], index: 3, kind: input, shape index: {}]
  %s4 = inlined_call_operand.hbm [shape: bf16[128,128], index: 4, kind: input, shape index: {}]
  %s5 = inlined_call_operand.vmem [shape: f32[1,128], index: 5, kind: input, shape index: {}]
  %s6 = inlined_call_operand.vmem [shape: bf16[64,32], index: 6, kind: input, shape index: {}]
  %s7 = inlined_call_operand.<no memory space> [shape: bf16[], index: 7, kind: input, shape index: {}]
  %s8 = inlined_call_operand.vmem [shape: f32[64,128], index: 8, kind: output, shape index: {}]
  %s9 = sld [smem:[#allocation0]]
  $region46: #{fully_connected_layers_forward.2} parent=0
    _
  %s11 = ssub.s32 1, %s9
  %s12 = scalar_select 0, %s11, %s9
  %v13 = vstv %s7
  %v14 = vunpack.i.l.bf16 %v13
  %v16 = vunpack.i.h.bf16 %v13
  $region1: #{fully_connected_layers_forward.2} parent=0
    #allocation7 [shape = 'u8[32768]{0}', space=vmem, size = 0x8000, scoped, tag = 'input window, operand 3, single buffered']
    #allocation8 [shape = 's32[1]{0}', space=sflag, size = 0x4, scoped, tag = 'scoped memory for fully_connected_layers_forward.2']
    #allocation9 [shape = 'u8[32768]{0}', space=vmem, size = 0x8000, scoped, tag = 'input window, operand 5, single buffered']
    #allocation10 [shape = 's32[1]{0}', space=sflag, size = 0x4, scoped, tag = 'scoped memory for fully_connected_layers_forward.2']
    #allocation11 [shape = 'u8[16384]{0}', space=vmem, size = 0x4000, dematerialized = true, scoped, tag = 'FusionAdapter Buffer %fusion.1 = bf16[64,128]{1,0:T(8,128)(2,1)} fusion(%param_6.1, %param_7), kind=kLoop, calls=%fused_computation.1.clone, metadata={op_name="jit(fully_connected_layers_forward)/jit(_pad)/pad" stack_frame_id=8}']
    %18 = vsyncpa [#allocation8], 0
    %19 = vsyncpa [#allocation10], 0
    // Predicated region
    $region2: #{fully_connected_layers_forward.2} parent=1 // pred_check
      _
    $region3: #{fully_connected_layers_forward.2} parent=1 // pred_check_branch
      %21 = sbr.rel (0) target = $region5
    $region4: #{fully_connected_layers_forward.2} parent=1 // pred_region
      _
    $region5: #{fully_connected_layers_forward.2} parent=1 // pred_fallthru
      _
    // Predicated region
    $region6: #{fully_connected_layers_forward.2} parent=1 // pred_check
      _
    $region7: #{fully_connected_layers_forward.2} parent=1 // pred_check_branch
      %23 = sbr.rel (0) target = $region9
    $region8: #{fully_connected_layers_forward.2} parent=1 // pred_region
      _
    $region9: #{fully_connected_layers_forward.2} parent=1 // pred_fallthru
      _
    // Predicated region
    $region10: #{fully_connected_layers_forward.2} parent=1 // pred_check
      _
    $region11: #{fully_connected_layers_forward.2} parent=1 // pred_check_branch
      %25 = sbr.rel (0) target = $region13
    $region12: #{fully_connected_layers_forward.2} parent=1 // pred_region
      _
    $region13: #{fully_connected_layers_forward.2} parent=1 // pred_fallthru
      _
    // Predicated region
    $region14: #{fully_connected_layers_forward.2} parent=1 // pred_check
      _
    $region15: #{fully_connected_layers_forward.2} parent=1 // pred_check_branch
      %27 = sbr.rel (0) target = $region17
    $region16: #{fully_connected_layers_forward.2} parent=1 // pred_region
      %s29 = ssub.s32 1024, 1024
      %30 = vsyncadd [#allocation8], %s29
      %s31 = sshll.u32 [#allocation7], 4
      %s32 = int_to_ptr.vmem [resolvable:$true] %s31
      %37 = dma.hbm_to_vmem [thread:$0]  %s2, 1024, %s32, [#allocation8], 64, 64, 4
    $region17: #{fully_connected_layers_forward.2} parent=1 // pred_fallthru
      _
    // Predicated region
    $region18: #{fully_connected_layers_forward.2} parent=1 // pred_check
      _
    $region19: #{fully_connected_layers_forward.2} parent=1 // pred_check_branch
      %39 = sbr.rel (0) target = $region21
    $region20: #{fully_connected_layers_forward.2} parent=1 // pred_region
      _
    $region21: #{fully_connected_layers_forward.2} parent=1 // pred_fallthru
      _
    // Predicated region
    $region22: #{fully_connected_layers_forward.2} parent=1 // pred_check
      _
    $region23: #{fully_connected_layers_forward.2} parent=1 // pred_check_branch
      %41 = sbr.rel (0) target = $region25
    $region24: #{fully_connected_layers_forward.2} parent=1 // pred_region
      %s43 = ssub.s32 1024, 1024
      %44 = vsyncadd [#allocation10], %s43
      %s45 = sshll.u32 [#allocation9], 4
      %s46 = int_to_ptr.vmem [resolvable:$true] %s45
      %51 = dma.hbm_to_vmem [thread:$0]  %s4, 1024, %s46, [#allocation10], 64, 64, 4
    $region25: #{fully_connected_layers_forward.2} parent=1 // pred_fallthru
      _
    // Predicated region
    $region26: #{fully_connected_layers_forward.2} parent=1 // pred_check
      _
    $region27: #{fully_connected_layers_forward.2} parent=1 // pred_check_branch
      %53 = sbr.rel (0) target = $region29
    $region28: #{fully_connected_layers_forward.2} parent=1 // pred_region
      _
    $region29: #{fully_connected_layers_forward.2} parent=1 // pred_fallthru
      _
    // Predicated region
    $region30: #{fully_connected_layers_forward.2} parent=1 // pred_check
      _
    $region31: #{fully_connected_layers_forward.2} parent=1 // pred_check_branch
      %55 = sbr.rel (0) target = $region33
    $region32: #{fully_connected_layers_forward.2} parent=1 // pred_region
      %56 = dma.done [#allocation8], 1024
    $region33: #{fully_connected_layers_forward.2} parent=1 // pred_fallthru
      _
    // Predicated region
    $region34: #{fully_connected_layers_forward.2} parent=1 // pred_check
      _
    $region35: #{fully_connected_layers_forward.2} parent=1 // pred_check_branch
      %58 = sbr.rel (0) target = $region37
    $region36: #{fully_connected_layers_forward.2} parent=1 // pred_region
      %59 = dma.done [#allocation10], 1024
    $region37: #{fully_connected_layers_forward.2} parent=1 // pred_fallthru
      _
    %s61 = sor.u32 255, 127
    %s62 = sand.u32 %s61, 85
    %s63 = sshrl.u32 %s62, 1
    %s64 = sor.u32 %s62, %s63
    %s65 = sand.u32 51, %s64
    %s66 = sshrl.u32 %s65, 2
    %s67 = sor.u32 %s65, %s66
    %s68 = sand.u32 15, %s67
    %v69 = vld [vmem:[%s6] sm:%s68]
    %v70 = vunpack.c.l.bf16 %v69
    %v71 = vunpack.c.h.bf16 %v69
    %v72 = vlaneseq
    %v73 = vand.u32 %v72, 127
    %vm75 = vcmp.lt.s32.totalorder %v73, 32
    %v76 = vsel %vm75, %v70, %v14
    %v77 = vpack.c.bf16 0.0, %v76
    %79 = vst [vmem:[#allocation11] sm:$0xf] %v77
    %s80 = scalar_lea.vmem %s6, 4
    %s82 = sor.u32 255, 127
    %s83 = sand.u32 %s82, 85
    %s84 = sshrl.u32 %s83, 1
    %s85 = sor.u32 %s83, %s84
    %s86 = sand.u32 51, %s85
    %s87 = sshrl.u32 %s86, 2
    %s88 = sor.u32 %s86, %s87
    %s89 = sand.u32 15, %s88
    %v90 = vld [vmem:[%s80] sm:%s89]
    %v91 = vunpack.c.l.bf16 %v90
    %v92 = vunpack.c.h.bf16 %v90
    %v93 = vlaneseq
    %v94 = vand.u32 %v93, 127
    %vm96 = vcmp.lt.s32.totalorder %v94, 32
    %v97 = vsel %vm96, %v91, %v14
    %s98 = scalar_lea.vmem [#allocation11], 4
    %v99 = vpack.c.bf16 0.0, %v97
    %101 = vst [vmem:[%s98] sm:$0xf] %v99
    %s102 = scalar_lea.vmem %s6, 8
    %s104 = sor.u32 255, 127
    %s105 = sand.u32 %s104, 85
    %s106 = sshrl.u32 %s105, 1
    %s107 = sor.u32 %s105, %s106
    %s108 = sand.u32 51, %s107
    %s109 = sshrl.u32 %s108, 2
    %s110 = sor.u32 %s108, %s109
    %s111 = sand.u32 15, %s110
    %v112 = vld [vmem:[%s102] sm:%s111]
    %v113 = vunpack.c.l.bf16 %v112
    %v114 = vunpack.c.h.bf16 %v112
    %v115 = vlaneseq
    %v116 = vand.u32 %v115, 127
    %vm118 = vcmp.lt.s32.totalorder %v116, 32
    %v119 = vsel %vm118, %v113, %v14
    %s120 = scalar_lea.vmem [#allocation11], 8
    %v121 = vpack.c.bf16 0.0, %v119
    %123 = vst [vmem:[%s120] sm:$0xf] %v121
    %s124 = scalar_lea.vmem %s6, 12
    %s126 = sor.u32 255, 127
    %s127 = sand.u32 %s126, 85
    %s128 = sshrl.u32 %s127, 1
    %s129 = sor.u32 %s127, %s128
    %s130 = sand.u32 51, %s129
    %s131 = sshrl.u32 %s130, 2
    %s132 = sor.u32 %s130, %s131
    %s133 = sand.u32 15, %s132
    %v134 = vld [vmem:[%s124] sm:%s133]
    %v135 = vunpack.c.l.bf16 %v134
    %v136 = vunpack.c.h.bf16 %v134
    %v137 = vlaneseq
    %v138 = vand.u32 %v137, 127
    %vm140 = vcmp.lt.s32.totalorder %v138, 32
    %v141 = vsel %vm140, %v135, %v14
    %s142 = scalar_lea.vmem [#allocation11], 12
    %v143 = vpack.c.bf16 0.0, %v141
    %145 = vst [vmem:[%s142] sm:$0xf] %v143
    %s146 = scalar_lea.vmem %s6, 16
    %s148 = sor.u32 255, 127
    %s149 = sand.u32 %s148, 85
    %s150 = sshrl.u32 %s149, 1
    %s151 = sor.u32 %s149, %s150
    %s152 = sand.u32 51, %s151
    %s153 = sshrl.u32 %s152, 2
    %s154 = sor.u32 %s152, %s153
    %s155 = sand.u32 15, %s154
    %v156 = vld [vmem:[%s146] sm:%s155]
    %v157 = vunpack.c.l.bf16 %v156
    %v158 = vunpack.c.h.bf16 %v156
    %v159 = vlaneseq
    %v160 = vand.u32 %v159, 127
    %vm162 = vcmp.lt.s32.totalorder %v160, 32
    %v163 = vsel %vm162, %v157, %v14
    %s164 = scalar_lea.vmem [#allocation11], 16
    %v165 = vpack.c.bf16 0.0, %v163
    %167 = vst [vmem:[%s164] sm:$0xf] %v165
    %s168 = scalar_lea.vmem %s6, 20
    %s170 = sor.u32 255, 127
    %s171 = sand.u32 %s170, 85
    %s172 = sshrl.u32 %s171, 1
    %s173 = sor.u32 %s171, %s172
    %s174 = sand.u32 51, %s173
    %s175 = sshrl.u32 %s174, 2
    %s176 = sor.u32 %s174, %s175
    %s177 = sand.u32 15, %s176
    %v178 = vld [vmem:[%s168] sm:%s177]
    %v179 = vunpack.c.l.bf16 %v178
    %v180 = vunpack.c.h.bf16 %v178
    %v181 = vlaneseq
    %v182 = vand.u32 %v181, 127
    %vm184 = vcmp.lt.s32.totalorder %v182, 32
    %v185 = vsel %vm184, %v179, %v14
    %s186 = scalar_lea.vmem [#allocation11], 20
    %v187 = vpack.c.bf16 0.0, %v185
    %189 = vst [vmem:[%s186] sm:$0xf] %v187
    %s190 = scalar_lea.vmem %s6, 24
    %s192 = sor.u32 255, 127
    %s193 = sand.u32 %s192, 85
    %s194 = sshrl.u32 %s193, 1
    %s195 = sor.u32 %s193, %s194
    %s196 = sand.u32 51, %s195
    %s197 = sshrl.u32 %s196, 2
    %s198 = sor.u32 %s196, %s197
    %s199 = sand.u32 15, %s198
    %v200 = vld [vmem:[%s190] sm:%s199]
    %v201 = vunpack.c.l.bf16 %v200
    %v202 = vunpack.c.h.bf16 %v200
    %v203 = vlaneseq
    %v204 = vand.u32 %v203, 127
    %vm206 = vcmp.lt.s32.totalorder %v204, 32
    %v207 = vsel %vm206, %v201, %v14
    %s208 = scalar_lea.vmem [#allocation11], 24
    %v209 = vpack.c.bf16 0.0, %v207
    %211 = vst [vmem:[%s208] sm:$0xf] %v209
    %s212 = scalar_lea.vmem %s6, 28
    %s214 = sor.u32 255, 127
    %s215 = sand.u32 %s214, 85
    %s216 = sshrl.u32 %s215, 1
    %s217 = sor.u32 %s215, %s216
    %s218 = sand.u32 51, %s217
    %s219 = sshrl.u32 %s218, 2
    %s220 = sor.u32 %s218, %s219
    %s221 = sand.u32 15, %s220
    %v222 = vld [vmem:[%s212] sm:%s221]
    %v223 = vunpack.c.l.bf16 %v222
    %v224 = vunpack.c.h.bf16 %v222
    %v225 = vlaneseq
    %v226 = vand.u32 %v225, 127
    %vm228 = vcmp.lt.s32.totalorder %v226, 32
    %v229 = vsel %vm228, %v223, %v14
    %s230 = scalar_lea.vmem [#allocation11], 28
    %v231 = vpack.c.bf16 0.0, %v229
    %233 = vst [vmem:[%s230] sm:$0xf] %v231
    %v235 = vld [vmem:[#allocation11] sm:$0xf]
    %v236 = vld [vmem:[#allocation11 + $0x4] sm:$0xf]
    %v237 = vld [vmem:[#allocation11 + $0x8] sm:$0xf]
    %v238 = vld [vmem:[#allocation11 + $0xc] sm:$0xf]
    %v239 = vld [vmem:[#allocation11 + $0x10] sm:$0xf]
    %v240 = vld [vmem:[#allocation11 + $0x14] sm:$0xf]
    %v241 = vld [vmem:[#allocation11 + $0x18] sm:$0xf]
    %v242 = vld [vmem:[#allocation11 + $0x1c] sm:$0xf]
    %v243 = vld [vmem:[%s0] sm:$0xf]
    %v244 = vld [vmem:[%s0 + $0x4] sm:$0xf]
    %v245 = vld [vmem:[%s0 + $0x8] sm:$0xf]
    %v246 = vld [vmem:[%s0 + $0xc] sm:$0xf]
    %v247 = vld [vmem:[%s0 + $0x10] sm:$0xf]
    %v248 = vld [vmem:[%s0 + $0x14] sm:$0xf]
    %v249 = vld [vmem:[%s0 + $0x18] sm:$0xf]
    %v250 = vld [vmem:[%s0 + $0x1c] sm:$0xf]
    %v251 = vld [vmem:[%s0 + $0x20] sm:$0xf]
    %v252 = vld [vmem:[%s0 + $0x24] sm:$0xf]
    %v253 = vld [vmem:[%s0 + $0x28] sm:$0xf]
    %v254 = vld [vmem:[%s0 + $0x2c] sm:$0xf]
    %v255 = vld [vmem:[%s0 + $0x30] sm:$0xf]
    %v256 = vld [vmem:[%s0 + $0x34] sm:$0xf]
    %v257 = vld [vmem:[%s0 + $0x38] sm:$0xf]
    %v258 = vld [vmem:[%s0 + $0x3c] sm:$0xf]
    %v259 = vld [vmem:[%s1] sm:$0x1]
    %v261 = vlaneseq
    %v262 = vshrl.u32 %v261, 7
    %v263 = vsub.s32 0, %v262
    %v264 = vrot.slane %v259, %v263
    %v274 = vunpack.c.l.b16 %v235
    %v275 = vunpack.c.l.b16 %v236
    %v276 = vunpack.c.l.b16 %v237
    %v277 = vunpack.c.l.b16 %v238
    %v278 = vunpack.c.l.b16 %v239
    %v279 = vunpack.c.l.b16 %v240
    %v280 = vunpack.c.l.b16 %v241
    %v281 = vunpack.c.l.b16 %v242
    %v282 = vpack.c.b16 %v275, %v274
    %v283 = vpack.c.b16 %v277, %v276
    %v284 = vpack.c.b16 %v279, %v278
    %v285 = vpack.c.b16 %v281, %v280
    %v306 = vunpack.c.l.b16 %v243
    %v307 = vunpack.c.l.b16 %v244
    %v308 = vunpack.c.l.b16 %v245
    %v309 = vunpack.c.l.b16 %v246
    %v310 = vunpack.c.l.b16 %v247
    %v311 = vunpack.c.l.b16 %v248
    %v312 = vunpack.c.l.b16 %v249
    %v313 = vunpack.c.l.b16 %v250
    %v314 = vunpack.c.l.b16 %v251
    %v315 = vunpack.c.l.b16 %v252
    %v316 = vunpack.c.l.b16 %v253
    %v317 = vunpack.c.l.b16 %v254
    %v318 = vunpack.c.l.b16 %v255
    %v319 = vunpack.c.l.b16 %v256
    %v320 = vunpack.c.l.b16 %v257
    %v321 = vunpack.c.l.b16 %v258
    %v322 = vpack.c.b16 %v307, %v306
    %v323 = vpack.c.b16 %v309, %v308
    %v324 = vpack.c.b16 %v311, %v310
    %v325 = vpack.c.b16 %v313, %v312
    %v326 = vpack.c.b16 %v315, %v314
    %v327 = vpack.c.b16 %v317, %v316
    %v328 = vpack.c.b16 %v319, %v318
    %v329 = vpack.c.b16 %v321, %v320
    %338 = vmatprep.subr.bf16.mxu0 0
    %339 = vmatpush1.bf16.msra.mxu0 %v322
    %340 = vmatprep.subr.bf16.mxu0 0
    %341 = vmatpush1.bf16.msra.mxu0 %v323
    %342 = vmatprep.subr.bf16.mxu0 0
    %343 = vmatpush1.bf16.msra.mxu0 %v324
    %344 = vmatprep.subr.bf16.mxu0 0
    %345 = vmatpush1.bf16.msra.mxu0 %v325
    %346 = vmatprep.subr.bf16.mxu0 0
    %347 = vmatpush1.bf16.msra.mxu0 %v326
    %348 = vmatprep.subr.bf16.mxu0 0
    %349 = vmatpush1.bf16.msra.mxu0 %v327
    %350 = vmatprep.subr.bf16.mxu0 0
    %351 = vmatpush1.bf16.msra.mxu0 %v328
    %352 = vmatprep.subr.bf16.mxu0 0
    %353 = vmatpush1.bf16.msra.mxu0 %v329
    %354 = vmatprep.subr.bf16.mxu0 0
    %355 = vmatpush1.bf16.msra.mxu0 0
    %356 = vmatprep.subr.bf16.mxu0 0
    %357 = vmatpush1.bf16.msra.mxu0 0
    %358 = vmatprep.subr.bf16.mxu0 0
    %359 = vmatpush1.bf16.msra.mxu0 0
    %360 = vmatprep.subr.bf16.mxu0 0
    %361 = vmatpush1.bf16.msra.mxu0 0
    %362 = vmatprep.subr.bf16.mxu0 0
    %363 = vmatpush1.bf16.msra.mxu0 0
    %364 = vmatprep.subr.bf16.mxu0 0
    %365 = vmatpush1.bf16.msra.mxu0 0
    %366 = vmatprep.subr.bf16.mxu0 0
    %367 = vmatpush1.bf16.msra.mxu0 0
    %368 = vmatprep.subr.bf16.mxu0 0
    %369 = vmatpush1.bf16.msra.mxu0 0
    %370 = vmatprep.mubr.bf16.mxu0 0
    %371 = vmatmul.mubr.bf16.gmra.mrb[0].mxu0 %v282
    %v372 = vpop.f32.mrb[0].mxu0
    %v373 = vadd.f32 %v264, %v372
    %v374 = vpop.f32.mrb[0].mxu0
    %v375 = vpop.f32.mrb[0].mxu0
    %v376 = vadd.f32 %v264, %v375
    %v377 = vpop.f32.mrb[0].mxu0
    %378 = vmatprep.mubr.bf16.mxu0 0
    %379 = vmatmul.mubr.bf16.gmra.mrb[0].mxu0 %v283
    %v380 = vpop.f32.mrb[0].mxu0
    %v381 = vadd.f32 %v264, %v380
    %v382 = vpop.f32.mrb[0].mxu0
    %v383 = vpop.f32.mrb[0].mxu0
    %v384 = vadd.f32 %v264, %v383
    %v385 = vpop.f32.mrb[0].mxu0
    %386 = vmatprep.mubr.bf16.mxu0 0
    %387 = vmatmul.mubr.bf16.gmra.mrb[0].mxu0 %v284
    %v388 = vpop.f32.mrb[0].mxu0
    %v389 = vadd.f32 %v264, %v388
    %v390 = vpop.f32.mrb[0].mxu0
    %v391 = vpop.f32.mrb[0].mxu0
    %v392 = vadd.f32 %v264, %v391
    %v393 = vpop.f32.mrb[0].mxu0
    %394 = vmatprep.mubr.bf16.mxu0 0
    %395 = vmatmul.mubr.bf16.gmra.mrb[0].mxu0 %v285
    %v396 = vpop.f32.mrb[0].mxu0
    %v397 = vadd.f32 %v264, %v396
    %v398 = vpop.f32.mrb[0].mxu0
    %v399 = vpop.f32.mrb[0].mxu0
    %v400 = vadd.f32 %v264, %v399
    %v401 = vpop.f32.mrb[0].mxu0
    %402 = vdwg.mxu0
    %v403 = vmax.f32 %v373, 0.0
    %v404 = vmax.f32 %v376, 0.0
    %v405 = vmax.f32 %v381, 0.0
    %v406 = vmax.f32 %v384, 0.0
    %v407 = vmax.f32 %v389, 0.0
    %v408 = vmax.f32 %v392, 0.0
    %v409 = vmax.f32 %v397, 0.0
    %v410 = vmax.f32 %v400, 0.0
    %v411 = vpack.c.bf16 %v404, %v403
    %v412 = vpack.c.bf16 %v406, %v405
    %v413 = vpack.c.bf16 %v408, %v407
    %v414 = vpack.c.bf16 %v410, %v409
    %v415 = vld [vmem:[#allocation7] sm:$0xf]
    %v416 = vld [vmem:[#allocation7 + $0x4] sm:$0xf]
    %v417 = vld [vmem:[#allocation7 + $0x8] sm:$0xf]
    %v418 = vld [vmem:[#allocation7 + $0xc] sm:$0xf]
    %v419 = vld [vmem:[#allocation7 + $0x10] sm:$0xf]
    %v420 = vld [vmem:[#allocation7 + $0x14] sm:$0xf]
    %v421 = vld [vmem:[#allocation7 + $0x18] sm:$0xf]
    %v422 = vld [vmem:[#allocation7 + $0x1c] sm:$0xf]
    %v423 = vld [vmem:[#allocation7 + $0x20] sm:$0xf]
    %v424 = vld [vmem:[#allocation7 + $0x24] sm:$0xf]
    %v425 = vld [vmem:[#allocation7 + $0x28] sm:$0xf]
    %v426 = vld [vmem:[#allocation7 + $0x2c] sm:$0xf]
    %v427 = vld [vmem:[#allocation7 + $0x30] sm:$0xf]
    %v428 = vld [vmem:[#allocation7 + $0x34] sm:$0xf]
    %v429 = vld [vmem:[#allocation7 + $0x38] sm:$0xf]
    %v430 = vld [vmem:[#allocation7 + $0x3c] sm:$0xf]
    %v431 = vld [vmem:[%s3] sm:$0x1]
    %v433 = vlaneseq
    %v434 = vshrl.u32 %v433, 7
    %v435 = vsub.s32 0, %v434
    %v436 = vrot.slane %v431, %v435
    %v454 = vunpack.c.l.b16 %v415
    %v455 = vunpack.c.l.b16 %v416
    %v456 = vunpack.c.l.b16 %v417
    %v457 = vunpack.c.l.b16 %v418
    %v458 = vunpack.c.l.b16 %v419
    %v459 = vunpack.c.l.b16 %v420
    %v460 = vunpack.c.l.b16 %v421
    %v461 = vunpack.c.l.b16 %v422
    %v462 = vunpack.c.l.b16 %v423
    %v463 = vunpack.c.l.b16 %v424
    %v464 = vunpack.c.l.b16 %v425
    %v465 = vunpack.c.l.b16 %v426
    %v466 = vunpack.c.l.b16 %v427
    %v467 = vunpack.c.l.b16 %v428
    %v468 = vunpack.c.l.b16 %v429
    %v469 = vunpack.c.l.b16 %v430
    %v470 = vpack.c.b16 %v455, %v454
    %v471 = vpack.c.b16 %v457, %v456
    %v472 = vpack.c.b16 %v459, %v458
    %v473 = vpack.c.b16 %v461, %v460
    %v474 = vpack.c.b16 %v463, %v462
    %v475 = vpack.c.b16 %v465, %v464
    %v476 = vpack.c.b16 %v467, %v466
    %v477 = vpack.c.b16 %v469, %v468
    %486 = vmatprep.subr.bf16.mxu0 0
    %487 = vmatpush1.bf16.msra.mxu0 %v470
    %488 = vmatprep.subr.bf16.mxu0 0
    %489 = vmatpush1.bf16.msra.mxu0 %v471
    %490 = vmatprep.subr.bf16.mxu0 0
    %491 = vmatpush1.bf16.msra.mxu0 %v472
    %492 = vmatprep.subr.bf16.mxu0 0
    %493 = vmatpush1.bf16.msra.mxu0 %v473
    %494 = vmatprep.subr.bf16.mxu0 0
    %495 = vmatpush1.bf16.msra.mxu0 %v474
    %496 = vmatprep.subr.bf16.mxu0 0
    %497 = vmatpush1.bf16.msra.mxu0 %v475
    %498 = vmatprep.subr.bf16.mxu0 0
    %499 = vmatpush1.bf16.msra.mxu0 %v476
    %500 = vmatprep.subr.bf16.mxu0 0
    %501 = vmatpush1.bf16.msra.mxu0 %v477
    %502 = vmatprep.subr.bf16.mxu0 0
    %503 = vmatpush1.bf16.msra.mxu0 0
    %504 = vmatprep.subr.bf16.mxu0 0
    %505 = vmatpush1.bf16.msra.mxu0 0
    %506 = vmatprep.subr.bf16.mxu0 0
    %507 = vmatpush1.bf16.msra.mxu0 0
    %508 = vmatprep.subr.bf16.mxu0 0
    %509 = vmatpush1.bf16.msra.mxu0 0
    %510 = vmatprep.subr.bf16.mxu0 0
    %511 = vmatpush1.bf16.msra.mxu0 0
    %512 = vmatprep.subr.bf16.mxu0 0
    %513 = vmatpush1.bf16.msra.mxu0 0
    %514 = vmatprep.subr.bf16.mxu0 0
    %515 = vmatpush1.bf16.msra.mxu0 0
    %516 = vmatprep.subr.bf16.mxu0 0
    %517 = vmatpush1.bf16.msra.mxu0 0
    %518 = vmatprep.mubr.bf16.mxu0 0
    %519 = vmatmul.mubr.bf16.gmra.mrb[0].mxu0 %v411
    %v520 = vpop.f32.mrb[0].mxu0
    %v521 = vadd.f32 %v436, %v520
    %v522 = vpop.f32.mrb[0].mxu0
    %v523 = vpop.f32.mrb[0].mxu0
    %v524 = vadd.f32 %v436, %v523
    %v525 = vpop.f32.mrb[0].mxu0
    %526 = vmatprep.mubr.bf16.mxu0 0
    %527 = vmatmul.mubr.bf16.gmra.mrb[0].mxu0 %v412
    %v528 = vpop.f32.mrb[0].mxu0
    %v529 = vadd.f32 %v436, %v528
    %v530 = vpop.f32.mrb[0].mxu0
    %v531 = vpop.f32.mrb[0].mxu0
    %v532 = vadd.f32 %v436, %v531
    %v533 = vpop.f32.mrb[0].mxu0
    %534 = vmatprep.mubr.bf16.mxu0 0
    %535 = vmatmul.mubr.bf16.gmra.mrb[0].mxu0 %v413
    %v536 = vpop.f32.mrb[0].mxu0
    %v537 = vadd.f32 %v436, %v536
    %v538 = vpop.f32.mrb[0].mxu0
    %v539 = vpop.f32.mrb[0].mxu0
    %v540 = vadd.f32 %v436, %v539
    %v541 = vpop.f32.mrb[0].mxu0
    %542 = vmatprep.mubr.bf16.mxu0 0
    %543 = vmatmul.mubr.bf16.gmra.mrb[0].mxu0 %v414
    %v544 = vpop.f32.mrb[0].mxu0
    %v545 = vadd.f32 %v436, %v544
    %v546 = vpop.f32.mrb[0].mxu0
    %v547 = vpop.f32.mrb[0].mxu0
    %v548 = vadd.f32 %v436, %v547
    %v549 = vpop.f32.mrb[0].mxu0
    %550 = vdwg.mxu0
    %v551 = vmax.f32 %v521, 0.0
    %v552 = vmax.f32 %v524, 0.0
    %v553 = vmax.f32 %v529, 0.0
    %v554 = vmax.f32 %v532, 0.0
    %v555 = vmax.f32 %v537, 0.0
    %v556 = vmax.f32 %v540, 0.0
    %v557 = vmax.f32 %v545, 0.0
    %v558 = vmax.f32 %v548, 0.0
    %v559 = vpack.c.bf16 %v552, %v551
    %v560 = vpack.c.bf16 %v554, %v553
    %v561 = vpack.c.bf16 %v556, %v555
    %v562 = vpack.c.bf16 %v558, %v557
    %v563 = vld [vmem:[#allocation9] sm:$0xf]
    %v564 = vld [vmem:[#allocation9 + $0x4] sm:$0xf]
    %v565 = vld [vmem:[#allocation9 + $0x8] sm:$0xf]
    %v566 = vld [vmem:[#allocation9 + $0xc] sm:$0xf]
    %v567 = vld [vmem:[#allocation9 + $0x10] sm:$0xf]
    %v568 = vld [vmem:[#allocation9 + $0x14] sm:$0xf]
    %v569 = vld [vmem:[#allocation9 + $0x18] sm:$0xf]
    %v570 = vld [vmem:[#allocation9 + $0x1c] sm:$0xf]
    %v571 = vld [vmem:[#allocation9 + $0x20] sm:$0xf]
    %v572 = vld [vmem:[#allocation9 + $0x24] sm:$0xf]
    %v573 = vld [vmem:[#allocation9 + $0x28] sm:$0xf]
    %v574 = vld [vmem:[#allocation9 + $0x2c] sm:$0xf]
    %v575 = vld [vmem:[#allocation9 + $0x30] sm:$0xf]
    %v576 = vld [vmem:[#allocation9 + $0x34] sm:$0xf]
    %v577 = vld [vmem:[#allocation9 + $0x38] sm:$0xf]
    %v578 = vld [vmem:[#allocation9 + $0x3c] sm:$0xf]
    %v579 = vld [vmem:[%s5] sm:$0x1]
    %v581 = vlaneseq
    %v582 = vshrl.u32 %v581, 7
    %v583 = vsub.s32 0, %v582
    %v584 = vrot.slane %v579, %v583
    %v602 = vunpack.c.l.b16 %v563
    %v603 = vunpack.c.l.b16 %v564
    %v604 = vunpack.c.l.b16 %v565
    %v605 = vunpack.c.l.b16 %v566
    %v606 = vunpack.c.l.b16 %v567
    %v607 = vunpack.c.l.b16 %v568
    %v608 = vunpack.c.l.b16 %v569
    %v609 = vunpack.c.l.b16 %v570
    %v610 = vunpack.c.l.b16 %v571
    %v611 = vunpack.c.l.b16 %v572
    %v612 = vunpack.c.l.b16 %v573
    %v613 = vunpack.c.l.b16 %v574
    %v614 = vunpack.c.l.b16 %v575
    %v615 = vunpack.c.l.b16 %v576
    %v616 = vunpack.c.l.b16 %v577
    %v617 = vunpack.c.l.b16 %v578
    %v618 = vpack.c.b16 %v603, %v602
    %v619 = vpack.c.b16 %v605, %v604
    %v620 = vpack.c.b16 %v607, %v606
    %v621 = vpack.c.b16 %v609, %v608
    %v622 = vpack.c.b16 %v611, %v610
    %v623 = vpack.c.b16 %v613, %v612
    %v624 = vpack.c.b16 %v615, %v614
    %v625 = vpack.c.b16 %v617, %v616
    %634 = vmatprep.subr.bf16.mxu0 0
    %635 = vmatpush1.bf16.msra.mxu0 %v618
    %636 = vmatprep.subr.bf16.mxu0 0
    %637 = vmatpush1.bf16.msra.mxu0 %v619
    %638 = vmatprep.subr.bf16.mxu0 0
    %639 = vmatpush1.bf16.msra.mxu0 %v620
    %640 = vmatprep.subr.bf16.mxu0 0
    %641 = vmatpush1.bf16.msra.mxu0 %v621
    %642 = vmatprep.subr.bf16.mxu0 0
    %643 = vmatpush1.bf16.msra.mxu0 %v622
    %644 = vmatprep.subr.bf16.mxu0 0
    %645 = vmatpush1.bf16.msra.mxu0 %v623
    %646 = vmatprep.subr.bf16.mxu0 0
    %647 = vmatpush1.bf16.msra.mxu0 %v624
    %648 = vmatprep.subr.bf16.mxu0 0
    %649 = vmatpush1.bf16.msra.mxu0 %v625
    %650 = vmatprep.subr.bf16.mxu0 0
    %651 = vmatpush1.bf16.msra.mxu0 0
    %652 = vmatprep.subr.bf16.mxu0 0
    %653 = vmatpush1.bf16.msra.mxu0 0
    %654 = vmatprep.subr.bf16.mxu0 0
    %655 = vmatpush1.bf16.msra.mxu0 0
    %656 = vmatprep.subr.bf16.mxu0 0
    %657 = vmatpush1.bf16.msra.mxu0 0
    %658 = vmatprep.subr.bf16.mxu0 0
    %659 = vmatpush1.bf16.msra.mxu0 0
    %660 = vmatprep.subr.bf16.mxu0 0
    %661 = vmatpush1.bf16.msra.mxu0 0
    %662 = vmatprep.subr.bf16.mxu0 0
    %663 = vmatpush1.bf16.msra.mxu0 0
    %664 = vmatprep.subr.bf16.mxu0 0
    %665 = vmatpush1.bf16.msra.mxu0 0
    %666 = vmatprep.mubr.bf16.mxu0 0
    %667 = vmatmul.mubr.bf16.gmra.mrb[0].mxu0 %v559
    %v668 = vpop.f32.mrb[0].mxu0
    %v669 = vadd.f32 %v584, %v668
    %v670 = vpop.f32.mrb[0].mxu0
    %v671 = vpop.f32.mrb[0].mxu0
    %v672 = vadd.f32 %v584, %v671
    %v673 = vpop.f32.mrb[0].mxu0
    %674 = vmatprep.mubr.bf16.mxu0 0
    %675 = vmatmul.mubr.bf16.gmra.mrb[0].mxu0 %v560
    %v676 = vpop.f32.mrb[0].mxu0
    %v677 = vadd.f32 %v584, %v676
    %v678 = vpop.f32.mrb[0].mxu0
    %v679 = vpop.f32.mrb[0].mxu0
    %v680 = vadd.f32 %v584, %v679
    %v681 = vpop.f32.mrb[0].mxu0
    %682 = vmatprep.mubr.bf16.mxu0 0
    %683 = vmatmul.mubr.bf16.gmra.mrb[0].mxu0 %v561
    %v684 = vpop.f32.mrb[0].mxu0
    %v685 = vadd.f32 %v584, %v684
    %v686 = vpop.f32.mrb[0].mxu0
    %v687 = vpop.f32.mrb[0].mxu0
    %v688 = vadd.f32 %v584, %v687
    %v689 = vpop.f32.mrb[0].mxu0
    %690 = vmatprep.mubr.bf16.mxu0 0
    %691 = vmatmul.mubr.bf16.gmra.mrb[0].mxu0 %v562
    %v692 = vpop.f32.mrb[0].mxu0
    %v693 = vadd.f32 %v584, %v692
    %v694 = vpop.f32.mrb[0].mxu0
    %v695 = vpop.f32.mrb[0].mxu0
    %v696 = vadd.f32 %v584, %v695
    %v697 = vpop.f32.mrb[0].mxu0
    %698 = vdwg.mxu0
    %v699 = vmax.f32 %v669, 0.0
    %v700 = vmax.f32 %v672, 0.0
    %v701 = vmax.f32 %v677, 0.0
    %v702 = vmax.f32 %v680, 0.0
    %v703 = vmax.f32 %v685, 0.0
    %v704 = vmax.f32 %v688, 0.0
    %v705 = vmax.f32 %v693, 0.0
    %v706 = vmax.f32 %v696, 0.0
    %707 = vst [vmem:[%s8] sm:$0xff] %v699
    %708 = vst [vmem:[%s8 + $0x8] sm:$0xff] %v700
    %709 = vst [vmem:[%s8 + $0x10] sm:$0xff] %v701
    %710 = vst [vmem:[%s8 + $0x18] sm:$0xff] %v702
    %711 = vst [vmem:[%s8 + $0x20] sm:$0xff] %v703
    %712 = vst [vmem:[%s8 + $0x28] sm:$0xff] %v704
    %713 = vst [vmem:[%s8 + $0x30] sm:$0xff] %v705
    %714 = vst [vmem:[%s8 + $0x38] sm:$0xff] %v706
    // Predicated region
    $region38: #{fully_connected_layers_forward.2} parent=1 // pred_check
      _
    $region39: #{fully_connected_layers_forward.2} parent=1 // pred_check_branch
      %716 = sbr.rel (0) target = $region41
    $region40: #{fully_connected_layers_forward.2} parent=1 // pred_region
      _
    $region41: #{fully_connected_layers_forward.2} parent=1 // pred_fallthru
      _
    // Predicated region
    $region42: #{fully_connected_layers_forward.2} parent=1 // pred_check
      _
    $region43: #{fully_connected_layers_forward.2} parent=1 // pred_check_branch
      %718 = sbr.rel (0) target = $region45
    $region44: #{fully_connected_layers_forward.2} parent=1 // pred_region
      _
    $region45: #{fully_connected_layers_forward.2} parent=1 // pred_fallthru
      _
    %719 = vsyncpa [#allocation8], 1
    %720 = vsyncpa [#allocation10], 1

</llo_original>
